<compile_context>
chip_gen: v7x
topology: tpu7x:2x2x1
jax: 0.10.0
libtpu: 0.0.40
codegen_flags: <defaults>
</compile_context>

<pallas_src>
import functools
import math

import jax
import jax.numpy as jnp
from jax.experimental import pallas as pl
from jax.experimental.pallas import tpu as pltpu


def _round_up(x, m):
    return (x + m - 1) // m * m


# ----------------------------------------------------------------------------- #
# Pallas kernel: per-stroke, per-row-tile distance-field rasterization           #
# ----------------------------------------------------------------------------- #
def _render_kernel(sy_ref, sx_ref, w_ref, aa_ref, out_ref, *, num_samples, row_tile):
    """Grid = (stroke, row-tile).  Renders one (1, TH, Wp) lane-dense output tile.

    sy_ref : SMEM (B*S,)  curve-sample row coords (pixels)
    sx_ref : SMEM (B*S,)  curve-sample col coords (pixels)
    w_ref  : SMEM (B,)    per-stroke width (pixels)
    aa_ref : SMEM (B,)    per-stroke anti-aliasing band (pixels)
    out_ref: VMEM (1, TH, Wp) rendered canvas tile
    """
    b = pl.program_id(0)
    TH, Wp = out_ref.shape[1], out_ref.shape[2]
    row0 = (pl.program_id(1) * row_tile).astype(jnp.float32)

    # Pixel-center coordinate grids for this row tile (int iota -> f32, safe Mosaic lowering).
    ys = jax.lax.broadcasted_iota(jnp.int32, (TH, Wp), 0).astype(jnp.float32) + (row0 + 0.5)
    xs = jax.lax.broadcasted_iota(jnp.int32, (TH, Wp), 1).astype(jnp.float32) + 0.5

    # Hoisted |p|^2 term.  Squared distance is expanded as
    #   |p - c|^2 = |p|^2 + (|c|^2 - 2 c.p)
    # so only the sample-dependent part lives inside the loop.
    r2 = ys * ys + xs * xs

    base = b * num_samples

    def partial_d2(s):
        # Scalar SMEM reads; the -2*c / |c|^2 terms are scalar-unit work off the VPU path.
        sy = sy_ref[base + s]
        sx = sx_ref[base + s]
        ay = -2.0 * sy
        ax = -2.0 * sx
        c = sy * sy + sx * sx
        # 2 vmul + 2 vadd per pixel.
        return (ay * ys + c) + ax * xs

    # Multiple independent min-accumulators break the serial dependency chain so the
    # LLO scheduler can co-issue samples across the 4 VALU slots.
    n_acc = min(4, num_samples)
    accs = [partial_d2(s) for s in range(n_acc)]
    # TODO(synk): for num_samples >> 64, switch to lax.fori_loop(..., unroll=4) to bound
    # vreg live ranges instead of a fully unrolled Python loop.
    for s in range(n_acc, num_samples):
        a = s % n_acc
        accs[a] = jnp.minimum(accs[a], partial_d2(s))
    # tree-min combine of the partial accumulators
    while len(accs) > 1:
        nxt = [jnp.minimum(accs[i], accs[i + 1]) for i in range(0, len(accs) - 1, 2)]
        if len(accs) % 2:
            nxt.append(accs[-1])
        accs = nxt

    # Add back the hoisted |p|^2 once; clamp tiny negatives from f32 cancellation.
    min_d2 = jnp.maximum(accs[0] + r2, 0.0)
    dist = jnp.sqrt(min_d2)

    # Hoisted per-stroke scalar math: one reciprocal per tile; per pixel just mul+sub+clip.
    width = w_ref[b]
    inv_aa = 1.0 / (aa_ref[b] + 1e-6)
    bias = 1.0 + width * inv_aa
    val = jnp.clip(bias - dist * inv_aa, 0.0, 1.0)

    out_ref[0] = val.astype(out_ref.dtype)


def render_strokes(samples, widths, aa_factors, canvas_shape, *, max_row_tile=256):
    """samples: (B, S, 2) pixel-space curve samples (y, x) -> canvas (B, H, W) float32."""
    B, S, _ = samples.shape
    H, W = canvas_shape

    # Lane-dense, VMEM-bounded tiling: pad W to a multiple of 128, H to a multiple of 8,
    # and split H into row tiles of at most `max_row_tile` rows.
    Wp = _round_up(W, 128)
    Hp = _round_up(H, 8)
    TH = min(Hp, _round_up(max_row_tile, 8))
    Hp = _round_up(Hp, TH)
    n_row_tiles = Hp // TH

    sy = samples[:, :, 0].reshape(B * S).astype(jnp.float32)
    sx = samples[:, :, 1].reshape(B * S).astype(jnp.float32)
    widths = jnp.asarray(widths, dtype=jnp.float32).reshape(B)
    aa_factors = jnp.asarray(aa_factors, dtype=jnp.float32).reshape(B)

    out_padded = pl.pallas_call(
        functools.partial(_render_kernel, num_samples=S, row_tile=TH),
        out_shape=jax.ShapeDtypeStruct((B, Hp, Wp), jnp.float32),
        grid=(B, n_row_tiles),
        in_specs=[
            pl.BlockSpec(memory_space=pltpu.MemorySpace.SMEM),   # sy  (B*S,) scalars
            pl.BlockSpec(memory_space=pltpu.MemorySpace.SMEM),   # sx  (B*S,) scalars
            pl.BlockSpec(memory_space=pltpu.MemorySpace.SMEM),   # widths (B,)
            pl.BlockSpec(memory_space=pltpu.MemorySpace.SMEM),   # aa factors (B,)
        ],
        out_specs=pl.BlockSpec((1, TH, Wp), lambda b, h: (b, h, 0)),
        compiler_params=pltpu.CompilerParams(
            dimension_semantics=("parallel", "parallel"),
            vmem_limit_bytes=32 * 1024 * 1024,
        ),
    )(sy, sx, widths, aa_factors)

    # Drop the padding rows/cols (padded pixels are rendered but discarded).
    return out_padded[:, :H, :W]


# ----------------------------------------------------------------------------- #
# Plain-JAX glue: Bezier curve sampling from the module's `inputs` parameter      #
# ----------------------------------------------------------------------------- #
def bezier_samples(key_points_px, num_samples):
    """key_points_px: (B, K, 2) pixel-space control points -> (B, S, 2) curve samples."""
    B, K, _ = key_points_px.shape
    n = K - 1
    t = jnp.linspace(0.0, 1.0, num_samples).astype(jnp.float32)          # (S,)
    k = jnp.arange(K, dtype=jnp.float32)                                 # (K,)
    binom = jnp.array([math.comb(n, i) for i in range(K)], jnp.float32)
    # Bernstein basis (S, K)
    bern = binom[None, :] * (t[:, None] ** k[None, :]) * ((1.0 - t[:, None]) ** (n - k)[None, :])
    return jnp.einsum("sk,bkc->bsc", bern, key_points_px)


def stroke_model_forward(inputs, widths, aa_factors, canvas_shape, num_samples=16):
    """Equivalent of StrokeModel.forward(): render each stroke onto its own canvas."""
    H, W = canvas_shape
    scale = jnp.array([H, W], dtype=jnp.float32)      # matches `input * canvas_shape_tensor`
    key_points_px = inputs.astype(jnp.float32) * scale
    samples = bezier_samples(key_points_px, num_samples)
    return render_strokes(samples, widths, aa_factors, canvas_shape)


if __name__ == "__main__":
    key = jax.random.PRNGKey(0)

    # Small deterministic config: 2 strokes, cubic Bezier (4 key points), 16x16 canvas.
    B, K, S = 2, 4, 16
    H, W = 16, 16
    canvas_shape = (H, W)

    # `initial_inputs` parameter of StrokeModel: normalized key points in [0, 1].
    inputs = jax.random.uniform(key, (B, K, 2), dtype=jnp.float32)
    widths = jnp.array([2.0, 3.0], dtype=jnp.float32)        # self.widths
    aa_factors = jnp.array([1.0, 1.5], dtype=jnp.float32)    # self.aa_factors

    canvas = stroke_model_forward(inputs, widths, aa_factors, canvas_shape, num_samples=S)
    canvas = jax.block_until_ready(canvas)

    assert canvas.shape == (B, H, W) and canvas.dtype == jnp.float32
    assert bool(jnp.all(jnp.isfinite(canvas)))
    assert bool(jnp.all(canvas >= 0.0)) and bool(jnp.all(canvas <= 1.0))
    print("KERNEL_OK")
</pallas_src>

<mosaic_0001>
module attributes {stable_mosaic.version = 11 : i64} {
  func.func @_render_kernel(%arg0: i32, %arg1: i32, %arg2: memref<32xf32, #tpu.memory_space<smem>>, %arg3: memref<32xf32, #tpu.memory_space<smem>>, %arg4: memref<2xf32, #tpu.memory_space<smem>>, %arg5: memref<2xf32, #tpu.memory_space<smem>>, %arg6: memref<1x16x128xf32, #tpu.memory_space<vmem>>) attributes {dimension_semantics = [#tpu.dimension_semantics<parallel>, #tpu.dimension_semantics<parallel>], iteration_bounds = array<i64: 2, 1>, scalar_prefetch = 0 : i64, scratch_operands = 0 : i64, tpu.core_type = #tpu.core_type<tc>, window_params = [{transform_indices = @transform_0, window_bounds = array<i64: 32>}, {transform_indices = @transform_1, window_bounds = array<i64: 32>}, {transform_indices = @transform_2, window_bounds = array<i64: 2>}, {transform_indices = @transform_3, window_bounds = array<i64: 2>}, {transform_indices = @transform_4, window_bounds = array<i64: 1, 16, 128>}]} {
    %c16_i32 = arith.constant 16 : i32
    %0 = arith.muli %arg1, %c16_i32 : i32
    %1 = arith.sitofp %0 : i32 to f32
    %2 = tpu.iota {dimensions = array<i32: 0>} : vector<16x128xi32>
    %3 = arith.sitofp %2 : vector<16x128xi32> to vector<16x128xf32>
    %cst = arith.constant 5.000000e-01 : f32
    %4 = arith.addf %1, %cst : f32
    %5 = vector.broadcast %4 : f32 to vector<16x128xf32>
    %6 = arith.addf %3, %5 : vector<16x128xf32>
    %7 = tpu.iota {dimensions = array<i32: 1>} : vector<16x128xi32>
    %8 = arith.sitofp %7 : vector<16x128xi32> to vector<16x128xf32>
    %cst_0 = arith.constant 5.000000e-01 : f32
    %9 = vector.broadcast %cst_0 : f32 to vector<16x128xf32>
    %10 = arith.addf %8, %9 : vector<16x128xf32>
    %11 = arith.mulf %6, %6 : vector<16x128xf32>
    %12 = arith.mulf %10, %10 : vector<16x128xf32>
    %13 = arith.addf %11, %12 : vector<16x128xf32>
    %c16_i32_1 = arith.constant 16 : i32
    %14 = arith.muli %arg0, %c16_i32_1 : i32
    %c0_i32 = arith.constant 0 : i32
    %15 = arith.addi %14, %c0_i32 : i32
    %16 = arith.index_cast %15 : i32 to index
    %17 = memref.load %arg2[%16] : memref<32xf32, #tpu.memory_space<smem>>
    %c0_i32_2 = arith.constant 0 : i32
    %18 = arith.addi %14, %c0_i32_2 : i32
    %19 = arith.index_cast %18 : i32 to index
    %20 = memref.load %arg3[%19] : memref<32xf32, #tpu.memory_space<smem>>
    %cst_3 = arith.constant -2.000000e+00 : f32
    %21 = arith.mulf %cst_3, %17 : f32
    %cst_4 = arith.constant -2.000000e+00 : f32
    %22 = arith.mulf %cst_4, %20 : f32
    %23 = arith.mulf %17, %17 : f32
    %24 = arith.mulf %20, %20 : f32
    %25 = arith.addf %23, %24 : f32
    %26 = vector.broadcast %21 : f32 to vector<16x128xf32>
    %27 = arith.mulf %26, %6 : vector<16x128xf32>
    %28 = vector.broadcast %25 : f32 to vector<16x128xf32>
    %29 = arith.addf %27, %28 : vector<16x128xf32>
    %30 = vector.broadcast %22 : f32 to vector<16x128xf32>
    %31 = arith.mulf %30, %10 : vector<16x128xf32>
    %32 = arith.addf %29, %31 : vector<16x128xf32>
    %c1_i32 = arith.constant 1 : i32
    %33 = arith.addi %14, %c1_i32 : i32
    %34 = arith.index_cast %33 : i32 to index
    %35 = memref.load %arg2[%34] : memref<32xf32, #tpu.memory_space<smem>>
    %c1_i32_5 = arith.constant 1 : i32
    %36 = arith.addi %14, %c1_i32_5 : i32
    %37 = arith.index_cast %36 : i32 to index
    %38 = memref.load %arg3[%37] : memref<32xf32, #tpu.memory_space<smem>>
    %cst_6 = arith.constant -2.000000e+00 : f32
    %39 = arith.mulf %cst_6, %35 : f32
    %cst_7 = arith.constant -2.000000e+00 : f32
    %40 = arith.mulf %cst_7, %38 : f32
    %41 = arith.mulf %35, %35 : f32
    %42 = arith.mulf %38, %38 : f32
    %43 = arith.addf %41, %42 : f32
    %44 = vector.broadcast %39 : f32 to vector<16x128xf32>
    %45 = arith.mulf %44, %6 : vector<16x128xf32>
    %46 = vector.broadcast %43 : f32 to vector<16x128xf32>
    %47 = arith.addf %45, %46 : vector<16x128xf32>
    %48 = vector.broadcast %40 : f32 to vector<16x128xf32>
    %49 = arith.mulf %48, %10 : vector<16x128xf32>
    %50 = arith.addf %47, %49 : vector<16x128xf32>
    %c2_i32 = arith.constant 2 : i32
    %51 = arith.addi %14, %c2_i32 : i32
    %52 = arith.index_cast %51 : i32 to index
    %53 = memref.load %arg2[%52] : memref<32xf32, #tpu.memory_space<smem>>
    %c2_i32_8 = arith.constant 2 : i32
    %54 = arith.addi %14, %c2_i32_8 : i32
    %55 = arith.index_cast %54 : i32 to index
    %56 = memref.load %arg3[%55] : memref<32xf32, #tpu.memory_space<smem>>
    %cst_9 = arith.constant -2.000000e+00 : f32
    %57 = arith.mulf %cst_9, %53 : f32
    %cst_10 = arith.constant -2.000000e+00 : f32
    %58 = arith.mulf %cst_10, %56 : f32
    %59 = arith.mulf %53, %53 : f32
    %60 = arith.mulf %56, %56 : f32
    %61 = arith.addf %59, %60 : f32
    %62 = vector.broadcast %57 : f32 to vector<16x128xf32>
    %63 = arith.mulf %62, %6 : vector<16x128xf32>
    %64 = vector.broadcast %61 : f32 to vector<16x128xf32>
    %65 = arith.addf %63, %64 : vector<16x128xf32>
    %66 = vector.broadcast %58 : f32 to vector<16x128xf32>
    %67 = arith.mulf %66, %10 : vector<16x128xf32>
    %68 = arith.addf %65, %67 : vector<16x128xf32>
    %c3_i32 = arith.constant 3 : i32
    %69 = arith.addi %14, %c3_i32 : i32
    %70 = arith.index_cast %69 : i32 to index
    %71 = memref.load %arg2[%70] : memref<32xf32, #tpu.memory_space<smem>>
    %c3_i32_11 = arith.constant 3 : i32
    %72 = arith.addi %14, %c3_i32_11 : i32
    %73 = arith.index_cast %72 : i32 to index
    %74 = memref.load %arg3[%73] : memref<32xf32, #tpu.memory_space<smem>>
    %cst_12 = arith.constant -2.000000e+00 : f32
    %75 = arith.mulf %cst_12, %71 : f32
    %cst_13 = arith.constant -2.000000e+00 : f32
    %76 = arith.mulf %cst_13, %74 : f32
    %77 = arith.mulf %71, %71 : f32
    %78 = arith.mulf %74, %74 : f32
    %79 = arith.addf %77, %78 : f32
    %80 = vector.broadcast %75 : f32 to vector<16x128xf32>
    %81 = arith.mulf %80, %6 : vector<16x128xf32>
    %82 = vector.broadcast %79 : f32 to vector<16x128xf32>
    %83 = arith.addf %81, %82 : vector<16x128xf32>
    %84 = vector.broadcast %76 : f32 to vector<16x128xf32>
    %85 = arith.mulf %84, %10 : vector<16x128xf32>
    %86 = arith.addf %83, %85 : vector<16x128xf32>
    %c4_i32 = arith.constant 4 : i32
    %87 = arith.addi %14, %c4_i32 : i32
    %88 = arith.index_cast %87 : i32 to index
    %89 = memref.load %arg2[%88] : memref<32xf32, #tpu.memory_space<smem>>
    %c4_i32_14 = arith.constant 4 : i32
    %90 = arith.addi %14, %c4_i32_14 : i32
    %91 = arith.index_cast %90 : i32 to index
    %92 = memref.load %arg3[%91] : memref<32xf32, #tpu.memory_space<smem>>
    %cst_15 = arith.constant -2.000000e+00 : f32
    %93 = arith.mulf %cst_15, %89 : f32
    %cst_16 = arith.constant -2.000000e+00 : f32
    %94 = arith.mulf %cst_16, %92 : f32
    %95 = arith.mulf %89, %89 : f32
    %96 = arith.mulf %92, %92 : f32
    %97 = arith.addf %95, %96 : f32
    %98 = vector.broadcast %93 : f32 to vector<16x128xf32>
    %99 = arith.mulf %98, %6 : vector<16x128xf32>
    %100 = vector.broadcast %97 : f32 to vector<16x128xf32>
    %101 = arith.addf %99, %100 : vector<16x128xf32>
    %102 = vector.broadcast %94 : f32 to vector<16x128xf32>
    %103 = arith.mulf %102, %10 : vector<16x128xf32>
    %104 = arith.addf %101, %103 : vector<16x128xf32>
    %105 = arith.minimumf %32, %104 : vector<16x128xf32>
    %c5_i32 = arith.constant 5 : i32
    %106 = arith.addi %14, %c5_i32 : i32
    %107 = arith.index_cast %106 : i32 to index
    %108 = memref.load %arg2[%107] : memref<32xf32, #tpu.memory_space<smem>>
    %c5_i32_17 = arith.constant 5 : i32
    %109 = arith.addi %14, %c5_i32_17 : i32
    %110 = arith.index_cast %109 : i32 to index
    %111 = memref.load %arg3[%110] : memref<32xf32, #tpu.memory_space<smem>>
    %cst_18 = arith.constant -2.000000e+00 : f32
    %112 = arith.mulf %cst_18, %108 : f32
    %cst_19 = arith.constant -2.000000e+00 : f32
    %113 = arith.mulf %cst_19, %111 : f32
    %114 = arith.mulf %108, %108 : f32
    %115 = arith.mulf %111, %111 : f32
    %116 = arith.addf %114, %115 : f32
    %117 = vector.broadcast %112 : f32 to vector<16x128xf32>
    %118 = arith.mulf %117, %6 : vector<16x128xf32>
    %119 = vector.broadcast %116 : f32 to vector<16x128xf32>
    %120 = arith.addf %118, %119 : vector<16x128xf32>
    %121 = vector.broadcast %113 : f32 to vector<16x128xf32>
    %122 = arith.mulf %121, %10 : vector<16x128xf32>
    %123 = arith.addf %120, %122 : vector<16x128xf32>
    %124 = arith.minimumf %50, %123 : vector<16x128xf32>
    %c6_i32 = arith.constant 6 : i32
    %125 = arith.addi %14, %c6_i32 : i32
    %126 = arith.index_cast %125 : i32 to index
    %127 = memref.load %arg2[%126] : memref<32xf32, #tpu.memory_space<smem>>
    %c6_i32_20 = arith.constant 6 : i32
    %128 = arith.addi %14, %c6_i32_20 : i32
    %129 = arith.index_cast %128 : i32 to index
    %130 = memref.load %arg3[%129] : memref<32xf32, #tpu.memory_space<smem>>
    %cst_21 = arith.constant -2.000000e+00 : f32
    %131 = arith.mulf %cst_21, %127 : f32
    %cst_22 = arith.constant -2.000000e+00 : f32
    %132 = arith.mulf %cst_22, %130 : f32
    %133 = arith.mulf %127, %127 : f32
    %134 = arith.mulf %130, %130 : f32
    %135 = arith.addf %133, %134 : f32
    %136 = vector.broadcast %131 : f32 to vector<16x128xf32>
    %137 = arith.mulf %136, %6 : vector<16x128xf32>
    %138 = vector.broadcast %135 : f32 to vector<16x128xf32>
    %139 = arith.addf %137, %138 : vector<16x128xf32>
    %140 = vector.broadcast %132 : f32 to vector<16x128xf32>
    %141 = arith.mulf %140, %10 : vector<16x128xf32>
    %142 = arith.addf %139, %141 : vector<16x128xf32>
    %143 = arith.minimumf %68, %142 : vector<16x128xf32>
    %c7_i32 = arith.constant 7 : i32
    %144 = arith.addi %14, %c7_i32 : i32
    %145 = arith.index_cast %144 : i32 to index
    %146 = memref.load %arg2[%145] : memref<32xf32, #tpu.memory_space<smem>>
    %c7_i32_23 = arith.constant 7 : i32
    %147 = arith.addi %14, %c7_i32_23 : i32
    %148 = arith.index_cast %147 : i32 to index
    %149 = memref.load %arg3[%148] : memref<32xf32, #tpu.memory_space<smem>>
    %cst_24 = arith.constant -2.000000e+00 : f32
    %150 = arith.mulf %cst_24, %146 : f32
    %cst_25 = arith.constant -2.000000e+00 : f32
    %151 = arith.mulf %cst_25, %149 : f32
    %152 = arith.mulf %146, %146 : f32
    %153 = arith.mulf %149, %149 : f32
    %154 = arith.addf %152, %153 : f32
    %155 = vector.broadcast %150 : f32 to vector<16x128xf32>
    %156 = arith.mulf %155, %6 : vector<16x128xf32>
    %157 = vector.broadcast %154 : f32 to vector<16x128xf32>
    %158 = arith.addf %156, %157 : vector<16x128xf32>
    %159 = vector.broadcast %151 : f32 to vector<16x128xf32>
    %160 = arith.mulf %159, %10 : vector<16x128xf32>
    %161 = arith.addf %158, %160 : vector<16x128xf32>
    %162 = arith.minimumf %86, %161 : vector<16x128xf32>
    %c8_i32 = arith.constant 8 : i32
    %163 = arith.addi %14, %c8_i32 : i32
    %164 = arith.index_cast %163 : i32 to index
    %165 = memref.load %arg2[%164] : memref<32xf32, #tpu.memory_space<smem>>
    %c8_i32_26 = arith.constant 8 : i32
    %166 = arith.addi %14, %c8_i32_26 : i32
    %167 = arith.index_cast %166 : i32 to index
    %168 = memref.load %arg3[%167] : memref<32xf32, #tpu.memory_space<smem>>
    %cst_27 = arith.constant -2.000000e+00 : f32
    %169 = arith.mulf %cst_27, %165 : f32
    %cst_28 = arith.constant -2.000000e+00 : f32
    %170 = arith.mulf %cst_28, %168 : f32
    %171 = arith.mulf %165, %165 : f32
    %172 = arith.mulf %168, %168 : f32
    %173 = arith.addf %171, %172 : f32
    %174 = vector.broadcast %169 : f32 to vector<16x128xf32>
    %175 = arith.mulf %174, %6 : vector<16x128xf32>
    %176 = vector.broadcast %173 : f32 to vector<16x128xf32>
    %177 = arith.addf %175, %176 : vector<16x128xf32>
    %178 = vector.broadcast %170 : f32 to vector<16x128xf32>
    %179 = arith.mulf %178, %10 : vector<16x128xf32>
    %180 = arith.addf %177, %179 : vector<16x128xf32>
    %181 = arith.minimumf %105, %180 : vector<16x128xf32>
    %c9_i32 = arith.constant 9 : i32
    %182 = arith.addi %14, %c9_i32 : i32
    %183 = arith.index_cast %182 : i32 to index
    %184 = memref.load %arg2[%183] : memref<32xf32, #tpu.memory_space<smem>>
    %c9_i32_29 = arith.constant 9 : i32
    %185 = arith.addi %14, %c9_i32_29 : i32
    %186 = arith.index_cast %185 : i32 to index
    %187 = memref.load %arg3[%186] : memref<32xf32, #tpu.memory_space<smem>>
    %cst_30 = arith.constant -2.000000e+00 : f32
    %188 = arith.mulf %cst_30, %184 : f32
    %cst_31 = arith.constant -2.000000e+00 : f32
    %189 = arith.mulf %cst_31, %187 : f32
    %190 = arith.mulf %184, %184 : f32
    %191 = arith.mulf %187, %187 : f32
    %192 = arith.addf %190, %191 : f32
    %193 = vector.broadcast %188 : f32 to vector<16x128xf32>
    %194 = arith.mulf %193, %6 : vector<16x128xf32>
    %195 = vector.broadcast %192 : f32 to vector<16x128xf32>
    %196 = arith.addf %194, %195 : vector<16x128xf32>
    %197 = vector.broadcast %189 : f32 to vector<16x128xf32>
    %198 = arith.mulf %197, %10 : vector<16x128xf32>
    %199 = arith.addf %196, %198 : vector<16x128xf32>
    %200 = arith.minimumf %124, %199 : vector<16x128xf32>
    %c10_i32 = arith.constant 10 : i32
    %201 = arith.addi %14, %c10_i32 : i32
    %202 = arith.index_cast %201 : i32 to index
    %203 = memref.load %arg2[%202] : memref<32xf32, #tpu.memory_space<smem>>
    %c10_i32_32 = arith.constant 10 : i32
    %204 = arith.addi %14, %c10_i32_32 : i32
    %205 = arith.index_cast %204 : i32 to index
    %206 = memref.load %arg3[%205] : memref<32xf32, #tpu.memory_space<smem>>
    %cst_33 = arith.constant -2.000000e+00 : f32
    %207 = arith.mulf %cst_33, %203 : f32
    %cst_34 = arith.constant -2.000000e+00 : f32
    %208 = arith.mulf %cst_34, %206 : f32
    %209 = arith.mulf %203, %203 : f32
    %210 = arith.mulf %206, %206 : f32
    %211 = arith.addf %209, %210 : f32
    %212 = vector.broadcast %207 : f32 to vector<16x128xf32>
    %213 = arith.mulf %212, %6 : vector<16x128xf32>
    %214 = vector.broadcast %211 : f32 to vector<16x128xf32>
    %215 = arith.addf %213, %214 : vector<16x128xf32>
    %216 = vector.broadcast %208 : f32 to vector<16x128xf32>
    %217 = arith.mulf %216, %10 : vector<16x128xf32>
    %218 = arith.addf %215, %217 : vector<16x128xf32>
    %219 = arith.minimumf %143, %218 : vector<16x128xf32>
    %c11_i32 = arith.constant 11 : i32
    %220 = arith.addi %14, %c11_i32 : i32
    %221 = arith.index_cast %220 : i32 to index
    %222 = memref.load %arg2[%221] : memref<32xf32, #tpu.memory_space<smem>>
    %c11_i32_35 = arith.constant 11 : i32
    %223 = arith.addi %14, %c11_i32_35 : i32
    %224 = arith.index_cast %223 : i32 to index
    %225 = memref.load %arg3[%224] : memref<32xf32, #tpu.memory_space<smem>>
    %cst_36 = arith.constant -2.000000e+00 : f32
    %226 = arith.mulf %cst_36, %222 : f32
    %cst_37 = arith.constant -2.000000e+00 : f32
    %227 = arith.mulf %cst_37, %225 : f32
    %228 = arith.mulf %222, %222 : f32
    %229 = arith.mulf %225, %225 : f32
    %230 = arith.addf %228, %229 : f32
    %231 = vector.broadcast %226 : f32 to vector<16x128xf32>
    %232 = arith.mulf %231, %6 : vector<16x128xf32>
    %233 = vector.broadcast %230 : f32 to vector<16x128xf32>
    %234 = arith.addf %232, %233 : vector<16x128xf32>
    %235 = vector.broadcast %227 : f32 to vector<16x128xf32>
    %236 = arith.mulf %235, %10 : vector<16x128xf32>
    %237 = arith.addf %234, %236 : vector<16x128xf32>
    %238 = arith.minimumf %162, %237 : vector<16x128xf32>
    %c12_i32 = arith.constant 12 : i32
    %239 = arith.addi %14, %c12_i32 : i32
    %240 = arith.index_cast %239 : i32 to index
    %241 = memref.load %arg2[%240] : memref<32xf32, #tpu.memory_space<smem>>
    %c12_i32_38 = arith.constant 12 : i32
    %242 = arith.addi %14, %c12_i32_38 : i32
    %243 = arith.index_cast %242 : i32 to index
    %244 = memref.load %arg3[%243] : memref<32xf32, #tpu.memory_space<smem>>
    %cst_39 = arith.constant -2.000000e+00 : f32
    %245 = arith.mulf %cst_39, %241 : f32
    %cst_40 = arith.constant -2.000000e+00 : f32
    %246 = arith.mulf %cst_40, %244 : f32
    %247 = arith.mulf %241, %241 : f32
    %248 = arith.mulf %244, %244 : f32
    %249 = arith.addf %247, %248 : f32
    %250 = vector.broadcast %245 : f32 to vector<16x128xf32>
    %251 = arith.mulf %250, %6 : vector<16x128xf32>
    %252 = vector.broadcast %249 : f32 to vector<16x128xf32>
    %253 = arith.addf %251, %252 : vector<16x128xf32>
    %254 = vector.broadcast %246 : f32 to vector<16x128xf32>
    %255 = arith.mulf %254, %10 : vector<16x128xf32>
    %256 = arith.addf %253, %255 : vector<16x128xf32>
    %257 = arith.minimumf %181, %256 : vector<16x128xf32>
    %c13_i32 = arith.constant 13 : i32
    %258 = arith.addi %14, %c13_i32 : i32
    %259 = arith.index_cast %258 : i32 to index
    %260 = memref.load %arg2[%259] : memref<32xf32, #tpu.memory_space<smem>>
    %c13_i32_41 = arith.constant 13 : i32
    %261 = arith.addi %14, %c13_i32_41 : i32
    %262 = arith.index_cast %261 : i32 to index
    %263 = memref.load %arg3[%262] : memref<32xf32, #tpu.memory_space<smem>>
    %cst_42 = arith.constant -2.000000e+00 : f32
    %264 = arith.mulf %cst_42, %260 : f32
    %cst_43 = arith.constant -2.000000e+00 : f32
    %265 = arith.mulf %cst_43, %263 : f32
    %266 = arith.mulf %260, %260 : f32
    %267 = arith.mulf %263, %263 : f32
    %268 = arith.addf %266, %267 : f32
    %269 = vector.broadcast %264 : f32 to vector<16x128xf32>
    %270 = arith.mulf %269, %6 : vector<16x128xf32>
    %271 = vector.broadcast %268 : f32 to vector<16x128xf32>
    %272 = arith.addf %270, %271 : vector<16x128xf32>
    %273 = vector.broadcast %265 : f32 to vector<16x128xf32>
    %274 = arith.mulf %273, %10 : vector<16x128xf32>
    %275 = arith.addf %272, %274 : vector<16x128xf32>
    %276 = arith.minimumf %200, %275 : vector<16x128xf32>
    %c14_i32 = arith.constant 14 : i32
    %277 = arith.addi %14, %c14_i32 : i32
    %278 = arith.index_cast %277 : i32 to index
    %279 = memref.load %arg2[%278] : memref<32xf32, #tpu.memory_space<smem>>
    %c14_i32_44 = arith.constant 14 : i32
    %280 = arith.addi %14, %c14_i32_44 : i32
    %281 = arith.index_cast %280 : i32 to index
    %282 = memref.load %arg3[%281] : memref<32xf32, #tpu.memory_space<smem>>
    %cst_45 = arith.constant -2.000000e+00 : f32
    %283 = arith.mulf %cst_45, %279 : f32
    %cst_46 = arith.constant -2.000000e+00 : f32
    %284 = arith.mulf %cst_46, %282 : f32
    %285 = arith.mulf %279, %279 : f32
    %286 = arith.mulf %282, %282 : f32
    %287 = arith.addf %285, %286 : f32
    %288 = vector.broadcast %283 : f32 to vector<16x128xf32>
    %289 = arith.mulf %288, %6 : vector<16x128xf32>
    %290 = vector.broadcast %287 : f32 to vector<16x128xf32>
    %291 = arith.addf %289, %290 : vector<16x128xf32>
    %292 = vector.broadcast %284 : f32 to vector<16x128xf32>
    %293 = arith.mulf %292, %10 : vector<16x128xf32>
    %294 = arith.addf %291, %293 : vector<16x128xf32>
    %295 = arith.minimumf %219, %294 : vector<16x128xf32>
    %c15_i32 = arith.constant 15 : i32
    %296 = arith.addi %14, %c15_i32 : i32
    %297 = arith.index_cast %296 : i32 to index
    %298 = memref.load %arg2[%297] : memref<32xf32, #tpu.memory_space<smem>>
    %c15_i32_47 = arith.constant 15 : i32
    %299 = arith.addi %14, %c15_i32_47 : i32
    %300 = arith.index_cast %299 : i32 to index
    %301 = memref.load %arg3[%300] : memref<32xf32, #tpu.memory_space<smem>>
    %cst_48 = arith.constant -2.000000e+00 : f32
    %302 = arith.mulf %cst_48, %298 : f32
    %cst_49 = arith.constant -2.000000e+00 : f32
    %303 = arith.mulf %cst_49, %301 : f32
    %304 = arith.mulf %298, %298 : f32
    %305 = arith.mulf %301, %301 : f32
    %306 = arith.addf %304, %305 : f32
    %307 = vector.broadcast %302 : f32 to vector<16x128xf32>
    %308 = arith.mulf %307, %6 : vector<16x128xf32>
    %309 = vector.broadcast %306 : f32 to vector<16x128xf32>
    %310 = arith.addf %308, %309 : vector<16x128xf32>
    %311 = vector.broadcast %303 : f32 to vector<16x128xf32>
    %312 = arith.mulf %311, %10 : vector<16x128xf32>
    %313 = arith.addf %310, %312 : vector<16x128xf32>
    %314 = arith.minimumf %238, %313 : vector<16x128xf32>
    %315 = arith.minimumf %257, %276 : vector<16x128xf32>
    %316 = arith.minimumf %295, %314 : vector<16x128xf32>
    %317 = arith.minimumf %315, %316 : vector<16x128xf32>
    %318 = arith.addf %317, %13 : vector<16x128xf32>
    %cst_50 = arith.constant 0.000000e+00 : f32
    %319 = vector.broadcast %cst_50 : f32 to vector<16x128xf32>
    %320 = arith.maximumf %318, %319 : vector<16x128xf32>
    %321 = math.sqrt %320 : vector<16x128xf32>
    %322 = arith.index_cast %arg0 : i32 to index
    %323 = memref.load %arg4[%322] : memref<2xf32, #tpu.memory_space<smem>>
    %324 = arith.index_cast %arg0 : i32 to index
    %325 = memref.load %arg5[%324] : memref<2xf32, #tpu.memory_space<smem>>
    %cst_51 = arith.constant 9.99999997E-7 : f32
    %326 = arith.addf %325, %cst_51 : f32
    %cst_52 = arith.constant 1.000000e+00 : f32
    %327 = arith.divf %cst_52, %326 : f32
    %328 = arith.mulf %323, %327 : f32
    %cst_53 = arith.constant 1.000000e+00 : f32
    %329 = arith.addf %cst_53, %328 : f32
    %330 = vector.broadcast %327 : f32 to vector<16x128xf32>
    %331 = arith.mulf %321, %330 : vector<16x128xf32>
    %332 = vector.broadcast %329 : f32 to vector<16x128xf32>
    %333 = arith.subf %332, %331 : vector<16x128xf32>
    %cst_54 = arith.constant 0.000000e+00 : f32
    %cst_55 = arith.constant 1.000000e+00 : f32
    %334 = vector.broadcast %cst_54 : f32 to vector<16x128xf32>
    %335 = arith.maximumf %334, %333 : vector<16x128xf32>
    %336 = vector.broadcast %cst_55 : f32 to vector<16x128xf32>
    %337 = arith.minimumf %336, %335 : vector<16x128xf32>
    %c0 = arith.constant 0 : index
    %c0_56 = arith.constant 0 : index
    %c0_57 = arith.constant 0 : index
    %338 = vector.load %arg6[%c0, %c0_56, %c0_57] : memref<1x16x128xf32, #tpu.memory_space<vmem>>, vector<1x16x128xf32>
    %339 = vector.shape_cast %338 : vector<1x16x128xf32> to vector<16x128xf32>
    %340 = vector.shape_cast %337 : vector<16x128xf32> to vector<1x16x128xf32>
    tpu.vector_store %arg6[%c0, %c0_56, %c0_57], %340 {strides = array<i32>} : memref<1x16x128xf32, #tpu.memory_space<vmem>>, vector<1x16x128xf32>,
    return
  }
  func.func @transform_0(%arg0: i32, %arg1: i32) -> i32 {
    %c0_i32 = arith.constant 0 : i32
    %c0_i32_0 = arith.constant 0 : i32
    return %c0_i32 : i32
  }
  func.func @transform_1(%arg0: i32, %arg1: i32) -> i32 {
    %c0_i32 = arith.constant 0 : i32
    %c0_i32_0 = arith.constant 0 : i32
    return %c0_i32 : i32
  }
  func.func @transform_2(%arg0: i32, %arg1: i32) -> i32 {
    %c0_i32 = arith.constant 0 : i32
    %c0_i32_0 = arith.constant 0 : i32
    return %c0_i32 : i32
  }
  func.func @transform_3(%arg0: i32, %arg1: i32) -> i32 {
    %c0_i32 = arith.constant 0 : i32
    %c0_i32_0 = arith.constant 0 : i32
    return %c0_i32 : i32
  }
  func.func @transform_4(%arg0: i32, %arg1: i32) -> (i32, i32, i32) {
    %c0_i32 = arith.constant 0 : i32
    %c0_i32_0 = arith.constant 0 : i32
    return %arg0, %arg1, %c0_i32 : i32, i32, i32
  }
}

</mosaic_0001>

<llo_original>
// kernel: tpu_custom_call.1
$region0: #{tpu_custom_call.1}
  #allocation0 [shape = 'u32[]', space=smem, size = 0x4, offset = 0x4, fixed_abs, tag = 'smem constant byte address 0x4 - core index']
  #allocation1 [shape = 'u32[144,128]{1,0:T(1,128)}', space=vmem, size = 0x12000, scoped, tag = 'internal scratch']
  %s0 = inlined_call_operand.hbm [shape: f32[32], index: 0, kind: input, shape index: {}]
  %s1 = inlined_call_operand.vmem [shape: f32[32], index: 1, kind: input, shape index: {}]
  %s2 = inlined_call_operand.vmem [shape: f32[2], index: 2, kind: input, shape index: {}]
  %s3 = inlined_call_operand.vmem [shape: f32[2], index: 3, kind: input, shape index: {}]
  %s4 = inlined_call_operand.hbm [shape: f32[2,16,128], index: 4, kind: output, shape index: {}]
  %s5 = sld [smem:[#allocation0]]
  $region65: #{tpu_custom_call.1} parent=0
    _
  %s7 = ssub.s32 1, %s5
  %s8 = scalar_select 0, %s7, %s5
  $region1: #{tpu_custom_call.1} parent=0
    #allocation2 [shape = 'u8[512]{0}', space=smem, size = 0x200, scoped, tag = 'input window, operand 0, single buffered']
    #allocation3 [shape = 's32[2]{0}', space=sflag, size = 0x8, scoped, tag = 'scoped memory for tpu_custom_call.1']
    #allocation4 [shape = 's32[2]{0}', space=sflag, size = 0x8, scoped, tag = 'scoped memory for tpu_custom_call.1']
    #allocation5 [shape = 's32[2]{0}', space=sflag, size = 0x8, scoped, tag = 'scoped memory for tpu_custom_call.1']
    #allocation6 [shape = 'u8[512]{0}', space=smem, size = 0x200, scoped, tag = 'input window, operand 1, single buffered']
    #allocation7 [shape = 'u8[512]{0}', space=smem, size = 0x200, scoped, tag = 'input window, operand 2, single buffered']
    #allocation8 [shape = 's32[1]{0}', space=sflag, size = 0x4, scoped, tag = 'scoped memory for tpu_custom_call.1']
    #allocation9 [shape = 'u8[512]{0}', space=smem, size = 0x200, scoped, tag = 'input window, operand 3, single buffered']
    #allocation10 [shape = 'u8[16384]{0}', space=vmem, size = 0x4000, scoped, tag = 'output window, operand 0']
    %9 = vsyncpa [#allocation4], 0
    %10 = vsyncpa [#allocation5], 0
    %11 = vsyncpa [#allocation8], 0
    %12 = vsyncpa [#allocation3], 0
    %s13 = scalar_lea.sflag [#allocation3], 1
    %14 = vsyncpa %s13, 0
    loop: start=0, step=1, limit=4
    $region2: #{tpu_custom_call.1} parent=1 // loop_pre_header
      _
    $region3: #{tpu_custom_call.1} parent=1 // loop_header
      %s16 = sphi 0, %s20
      %p17 = scmp.ge.s32.totalorder %s16, 4
      %s23 = sphi 0, %s35
      %s24 = sphi 0, %s31
      %s25 = sphi 0, %s23
      %s26 = sphi 0, %s24
      %s27 = sphi 0, %s25
      %s28 = sphi 0, %s26
      %s36 = sphi 0, %s36
      %s38 = sphi 0, %s36
      %s39 = sphi 0, %s38
      %s53 = sphi 0, %s39
      %s57 = sphi 0, %s57
      %s59 = sphi 0, %s57
      %s60 = sphi 0, %s59
      %s74 = sphi 0, %s60
      %s78 = sphi 0, %s78
      %s80 = sphi 0, %s78
      %s81 = sphi 0, %s80
      %s95 = sphi 0, %s81
      %s99 = sphi 0, %s99
      %s101 = sphi 0, %s99
      %s102 = sphi 0, %s101
      %s116 = sphi 0, %s102
      %s124 = sphi 0, %s126
      %s127 = sphi 0, %s124
      %s128 = sphi 0, %s127
      %s144 = sphi 0, %s128
    $region4: #{tpu_custom_call.1} parent=1 // loop_header_branch
      %19 = sbr.rel (%p17) target = $region8
    $region5: #{tpu_custom_call.1} parent=1 // loop_body
      %s21 = ssub.s32 %s16, 1
      %s22 = ssub.s32 %s16, 2
      %s29 = sadd.s32 1, %s24
      %p30 = scmp.ge.s32.totalorder %s29, 1
      %s31 = scalar_select %p30, 0, %s29
      %s32 = sadd.s32 1, %s23
      %s33 = scalar_select %p30, %s32, %s23
      %p34 = scmp.ge.s32.totalorder %s33, 2
      %s35 = scalar_select %p34, 0, %s33
      %s37 = sadd.s32 %s36, 1
      %p40 = scmp.eq.s32.totalorder %s16, 1
      %p41 = scmp.ne.s32.totalorder %s36, %s38
      %p42 = scmp.eq.s32.totalorder %s16, 0
      %p43 = por %p41, %p42
      %p44 = scmp.ne.s32.totalorder %s36, %s38
      %p45 = scmp.eq.s32.totalorder %s21, 1
      %p46 = por %p44, %p45
      %p47 = scmp.ne.s32.totalorder %s38, %s39
      %p48 = scmp.eq.s32.totalorder %s21, 0
      %p49 = por %p47, %p48
      %p50 = scmp.ne.s32.totalorder %s38, %s39
      %p51 = scmp.eq.s32.totalorder %s22, 1
      %p52 = por %p50, %p51
      %p54 = scmp.ne.s32.totalorder %s39, %s53
      %p55 = scmp.eq.s32.totalorder %s22, 0
      %p56 = por %p54, %p55
      %s58 = sadd.s32 %s57, 1
      %p61 = scmp.eq.s32.totalorder %s16, 1
      %p62 = scmp.ne.s32.totalorder %s57, %s59
      %p63 = scmp.eq.s32.totalorder %s16, 0
      %p64 = por %p62, %p63
      %p65 = scmp.ne.s32.totalorder %s57, %s59
      %p66 = scmp.eq.s32.totalorder %s21, 1
      %p67 = por %p65, %p66
      %p68 = scmp.ne.s32.totalorder %s59, %s60
      %p69 = scmp.eq.s32.totalorder %s21, 0
      %p70 = por %p68, %p69
      %p71 = scmp.ne.s32.totalorder %s59, %s60
      %p72 = scmp.eq.s32.totalorder %s22, 1
      %p73 = por %p71, %p72
      %p75 = scmp.ne.s32.totalorder %s60, %s74
      %p76 = scmp.eq.s32.totalorder %s22, 0
      %p77 = por %p75, %p76
      %s79 = sadd.s32 %s78, 1
      %p82 = scmp.eq.s32.totalorder %s16, 1
      %p83 = scmp.ne.s32.totalorder %s78, %s80
      %p84 = scmp.eq.s32.totalorder %s16, 0
      %p85 = por %p83, %p84
      %p86 = scmp.ne.s32.totalorder %s78, %s80
      %p87 = scmp.eq.s32.totalorder %s21, 1
      %p88 = por %p86, %p87
      %p89 = scmp.ne.s32.totalorder %s80, %s81
      %p90 = scmp.eq.s32.totalorder %s21, 0
      %p91 = por %p89, %p90
      %p92 = scmp.ne.s32.totalorder %s80, %s81
      %p93 = scmp.eq.s32.totalorder %s22, 1
      %p94 = por %p92, %p93
      %p96 = scmp.ne.s32.totalorder %s81, %s95
      %p97 = scmp.eq.s32.totalorder %s22, 0
      %p98 = por %p96, %p97
      %s100 = sadd.s32 %s99, 1
      %p103 = scmp.eq.s32.totalorder %s16, 1
      %p104 = scmp.ne.s32.totalorder %s99, %s101
      %p105 = scmp.eq.s32.totalorder %s16, 0
      %p106 = por %p104, %p105
      %p107 = scmp.ne.s32.totalorder %s99, %s101
      %p108 = scmp.eq.s32.totalorder %s21, 1
      %p109 = por %p107, %p108
      %p110 = scmp.ne.s32.totalorder %s101, %s102
      %p111 = scmp.eq.s32.totalorder %s21, 0
      %p112 = por %p110, %p111
      %p113 = scmp.ne.s32.totalorder %s101, %s102
      %p114 = scmp.eq.s32.totalorder %s22, 1
      %p115 = por %p113, %p114
      %p117 = scmp.ne.s32.totalorder %s102, %s116
      %p118 = scmp.eq.s32.totalorder %s22, 0
      %p119 = por %p117, %p118
      %s120 = ssub.s32 %s23, %s35
      %s121 = ssub.s32 %s24, %s31
      %s122 = sor.u32 %s120, %s121
      %p123 = scmp.eq.s32.totalorder %s122, 0
      %s125 = sadd.s32 %s124, 1
      %s126 = scalar_select %p123, %s124, %s125
      %p129 = pneg %p123
      %p130 = scmp.eq.s32.totalorder %s16, 1
      %p131 = por %p129, %p130
      %p132 = scmp.ne.s32.totalorder %s124, %s127
      %p133 = scmp.eq.s32.totalorder %s16, 0
      %p134 = por %p132, %p133
      %p135 = scmp.ne.s32.totalorder %s124, %s127
      %p136 = scmp.eq.s32.totalorder %s21, 1
      %p137 = por %p135, %p136
      %p138 = scmp.ne.s32.totalorder %s127, %s128
      %p139 = scmp.eq.s32.totalorder %s21, 0
      %p140 = por %p138, %p139
      %p141 = scmp.ne.s32.totalorder %s127, %s128
      %p142 = scmp.eq.s32.totalorder %s22, 1
      %p143 = por %p141, %p142
      %p145 = scmp.ne.s32.totalorder %s128, %s144
      %p146 = scmp.eq.s32.totalorder %s22, 0
      %p147 = por %p145, %p146
      %p148 = scmp.le.s32.totalorder 1, %s16
      %p149 = scmp.lt.s32.totalorder %s16, 3
      %p150 = pnand %p148, %p149
      %p151 = pneg %p150
      // Predicated region
      $region9: #{tpu_custom_call.1} parent=5 // pred_check
        _
      $region10: #{tpu_custom_call.1} parent=5 // pred_check_branch
        %153 = sbr.rel (%p150) target = $region12
      $region11: #{tpu_custom_call.1} parent=5 // pred_region
        %s154 = ssub.s32 %s16, 1
        // Predicated region
        $region13: #{tpu_custom_call.1} parent=11 // pred_check
          %p155 = pneg %p49
        $region14: #{tpu_custom_call.1} parent=11 // pred_check_branch
          %157 = sbr.rel (%p155) target = $region16
        $region15: #{tpu_custom_call.1} parent=11 // pred_region
          %s159 = ssub.s32 16, 16
          %160 = vsyncadd [#allocation4], %s159
          %163 = dma.hbm_to_smem %s0, 16, [#allocation2], [#allocation4]
        $region16: #{tpu_custom_call.1} parent=11 // pred_fallthru
          _
        // Predicated region
        $region17: #{tpu_custom_call.1} parent=11 // pred_check
          %p164 = pneg %p70
        $region18: #{tpu_custom_call.1} parent=11 // pred_check_branch
          %166 = sbr.rel (%p164) target = $region20
        $region19: #{tpu_custom_call.1} parent=11 // pred_region
          %s168 = ssub.s32 16, 16
          %169 = vsyncadd [#allocation5], %s168
          %s171 = sshll.u32 %s1, 4
          %s172 = int_to_ptr.vmem [resolvable:$true] %s171
          %174 = dma.vmem_to_smem %s172, 16, [#allocation6], [#allocation5]
        $region20: #{tpu_custom_call.1} parent=11 // pred_fallthru
          _
        // Predicated region
        $region21: #{tpu_custom_call.1} parent=11 // pred_check
          %p175 = pneg %p91
        $region22: #{tpu_custom_call.1} parent=11 // pred_check_branch
          %177 = sbr.rel (%p175) target = $region24
        $region23: #{tpu_custom_call.1} parent=11 // pred_region
          %s179 = ssub.s32 16, 16
          %180 = vsyncadd [#allocation8], %s179
          %s182 = sshll.u32 %s2, 4
          %s183 = int_to_ptr.vmem [resolvable:$true] %s182
          %185 = dma.vmem_to_smem %s183, 16, [#allocation7], [#allocation8]
        $region24: #{tpu_custom_call.1} parent=11 // pred_fallthru
          _
        // Predicated region
        $region25: #{tpu_custom_call.1} parent=11 // pred_check
          %p186 = pneg %p112
        $region26: #{tpu_custom_call.1} parent=11 // pred_check_branch
          %188 = sbr.rel (%p186) target = $region28
        $region27: #{tpu_custom_call.1} parent=11 // pred_region
          %s190 = ssub.s32 16, 16
          %191 = vsyncadd [#allocation8], %s190
          %s193 = sshll.u32 %s3, 4
          %s194 = int_to_ptr.vmem [resolvable:$true] %s193
          %196 = dma.vmem_to_smem %s194, 16, [#allocation9], [#allocation8]
        $region28: #{tpu_custom_call.1} parent=11 // pred_fallthru
          _
      $region12: #{tpu_custom_call.1} parent=5 // pred_fallthru
        _
      %p197 = scmp.lt.s32.totalorder %s16, 2
      // Predicated region
      $region29: #{tpu_custom_call.1} parent=5 // pred_check
        %p198 = pneg %p197
      $region30: #{tpu_custom_call.1} parent=5 // pred_check_branch
        %200 = sbr.rel (%p198) target = $region32
      $region31: #{tpu_custom_call.1} parent=5 // pred_region
        _
      $region32: #{tpu_custom_call.1} parent=5 // pred_fallthru
        _
      %p201 = scmp.le.s32.totalorder 1, %s16
      %p202 = scmp.lt.s32.totalorder %s16, 3
      %p203 = pnand %p201, %p202
      %p204 = pneg %p203
      // Predicated region
      $region33: #{tpu_custom_call.1} parent=5 // pred_check
        _
      $region34: #{tpu_custom_call.1} parent=5 // pred_check_branch
        %206 = sbr.rel (%p203) target = $region36
      $region35: #{tpu_custom_call.1} parent=5 // pred_region
        %s207 = ssub.s32 %s16, 1
        // Predicated region
        $region37: #{tpu_custom_call.1} parent=35 // pred_check
          %p208 = pneg %p49
        $region38: #{tpu_custom_call.1} parent=35 // pred_check_branch
          %210 = sbr.rel (%p208) target = $region40
        $region39: #{tpu_custom_call.1} parent=35 // pred_region
          %211 = dma.done [#allocation4], 16
        $region40: #{tpu_custom_call.1} parent=35 // pred_fallthru
          _
        // Predicated region
        $region41: #{tpu_custom_call.1} parent=35 // pred_check
          %p212 = pneg %p70
        $region42: #{tpu_custom_call.1} parent=35 // pred_check_branch
          %214 = sbr.rel (%p212) target = $region44
        $region43: #{tpu_custom_call.1} parent=35 // pred_region
          %215 = dma.done [#allocation5], 16
        $region44: #{tpu_custom_call.1} parent=35 // pred_fallthru
          _
        // Predicated region
        $region45: #{tpu_custom_call.1} parent=35 // pred_check
          %p216 = pneg %p91
        $region46: #{tpu_custom_call.1} parent=35 // pred_check_branch
          %218 = sbr.rel (%p216) target = $region48
        $region47: #{tpu_custom_call.1} parent=35 // pred_region
          %219 = dma.done [#allocation8], 16
        $region48: #{tpu_custom_call.1} parent=35 // pred_fallthru
          _
        // Predicated region
        $region49: #{tpu_custom_call.1} parent=35 // pred_check
          %p220 = pneg %p112
        $region50: #{tpu_custom_call.1} parent=35 // pred_check_branch
          %222 = sbr.rel (%p220) target = $region52
        $region51: #{tpu_custom_call.1} parent=35 // pred_region
          %223 = dma.done [#allocation8], 16
        $region52: #{tpu_custom_call.1} parent=35 // pred_fallthru
          _
        %224 = sfence
        %p225 = pneg %p49
        %p226 = pneg %p46
        %p227 = pneg %p70
        %p228 = pneg %p67
        %p229 = pneg %p91
        %p230 = pneg %p88
        %p231 = pneg %p112
        %p232 = pneg %p109
        %p233 = pneg %p140
        %p234 = pneg %p137
        %s235 = sand.u32 %s127, 1
        %s236 = scalar_lea.sflag [#allocation3], %s235
        %s237 = sand.u32 %s127, 1
        %s238 = smul.addr %s237, 16
        %s239 = scalar_lea.vmem [#allocation10], %s238
        %s240 = smul.u32 2, %s26
        %s241 = smul.u32 %s26, 16
        %s242 = scvt.s32.f32 %s241
        %v243 = vlaneseq
        %v244 = vshrl.u32 %v243, 7
        %v245 = vadd.s32 %v244, 8
        %v246 = vcvt.s32.f32 %v244
        %v247 = vcvt.s32.f32 %v245
        %s248 = sadd.f32 %s242, 0.5
        %v249 = vstv %s248
        %v250 = vadd.f32 %v246, %v249
        %v251 = vadd.f32 %v247, %v249
        %v252 = vlaneseq
        %v253 = vand.u32 %v252, 127
        %v254 = vcvt.s32.f32 %v253
        %v255 = vadd.f32 %v254, 0.5
        %v256 = vmul.f32 %v250, %v250
        %v257 = vmul.f32 %v251, %v251
        %v258 = vmul.f32 %v255, %v255
        %v259 = vadd.f32 %v256, %v258
        %v260 = vadd.f32 %v257, %v258
        %s261 = smul.u32 %s25, 16
        %s262 = sld [smem:[#allocation2 + %s261]]
        %s263 = sld [smem:[#allocation6 + %s261]]
        %s264 = smul.f32 %s262, -2.0
        %s265 = smul.f32 %s263, -2.0
        %s266 = smul.f32 %s262, %s262
        %s267 = smul.f32 %s263, %s263
        %s268 = sadd.f32 %s266, %s267
        %v269 = vstv %s264
        %v270 = vmul.f32 %v269, %v250
        %v271 = vmul.f32 %v269, %v251
        %v272 = vstv %s268
        %v273 = vadd.f32 %v270, %v272
        %v274 = vadd.f32 %v271, %v272
        %v275 = vstv %s265
        %v276 = vmul.f32 %v275, %v255
        %v277 = vadd.f32 %v273, %v276
        %v278 = vadd.f32 %v274, %v276
        %s279 = sadd.s32 %s261, 1
        %s280 = sld [smem:[#allocation2 + %s279]]
        %s281 = sld [smem:[#allocation6 + %s279]]
        %s282 = smul.f32 %s280, -2.0
        %s283 = smul.f32 %s281, -2.0
        %s284 = smul.f32 %s280, %s280
        %s285 = smul.f32 %s281, %s281
        %s286 = sadd.f32 %s284, %s285
        %v287 = vstv %s282
        %v288 = vmul.f32 %v287, %v250
        %v289 = vmul.f32 %v287, %v251
        %v290 = vstv %s286
        %v291 = vadd.f32 %v288, %v290
        %v292 = vadd.f32 %v289, %v290
        %v293 = vstv %s283
        %v294 = vmul.f32 %v293, %v255
        %v295 = vadd.f32 %v291, %v294
        %v296 = vadd.f32 %v292, %v294
        %s297 = sadd.s32 %s261, 2
        %s298 = sld [smem:[#allocation2 + %s297]]
        %s299 = sld [smem:[#allocation6 + %s297]]
        %s300 = smul.f32 %s298, -2.0
        %s301 = smul.f32 %s299, -2.0
        %s302 = smul.f32 %s298, %s298
        %s303 = smul.f32 %s299, %s299
        %s304 = sadd.f32 %s302, %s303
        %v305 = vstv %s300
        %v306 = vmul.f32 %v305, %v250
        %v307 = vmul.f32 %v305, %v251
        %v308 = vstv %s304
        %v309 = vadd.f32 %v306, %v308
        %v310 = vadd.f32 %v307, %v308
        %v311 = vstv %s301
        %v312 = vmul.f32 %v311, %v255
        %v313 = vadd.f32 %v309, %v312
        %v314 = vadd.f32 %v310, %v312
        %s315 = sadd.s32 %s261, 3
        %s316 = sld [smem:[#allocation2 + %s315]]
        %s317 = sld [smem:[#allocation6 + %s315]]
        %s318 = smul.f32 %s316, -2.0
        %s319 = smul.f32 %s317, -2.0
        %s320 = smul.f32 %s316, %s316
        %s321 = smul.f32 %s317, %s317
        %s322 = sadd.f32 %s320, %s321
        %v323 = vstv %s318
        %v324 = vmul.f32 %v323, %v250
        %v325 = vmul.f32 %v323, %v251
        %v326 = vstv %s322
        %v327 = vadd.f32 %v324, %v326
        %v328 = vadd.f32 %v325, %v326
        %v329 = vstv %s319
        %v330 = vmul.f32 %v329, %v255
        %v331 = vadd.f32 %v327, %v330
        %v332 = vadd.f32 %v328, %v330
        %s333 = sadd.s32 %s261, 4
        %s334 = sld [smem:[#allocation2 + %s333]]
        %s335 = sld [smem:[#allocation6 + %s333]]
        %s336 = smul.f32 %s334, -2.0
        %s337 = smul.f32 %s335, -2.0
        %s338 = smul.f32 %s334, %s334
        %s339 = smul.f32 %s335, %s335
        %s340 = sadd.f32 %s338, %s339
        %v341 = vstv %s336
        %v342 = vmul.f32 %v341, %v250
        %v343 = vmul.f32 %v341, %v251
        %v344 = vstv %s340
        %v345 = vadd.f32 %v342, %v344
        %v346 = vadd.f32 %v343, %v344
        %v347 = vstv %s337
        %v348 = vmul.f32 %v347, %v255
        %v349 = vadd.f32 %v345, %v348
        %v350 = vadd.f32 %v346, %v348
        %v351 = vmin.f32 %v277, %v349
        %v352 = vmin.f32 %v278, %v350
        %s353 = sadd.s32 %s261, 5
        %s354 = sld [smem:[#allocation2 + %s353]]
        %s355 = sld [smem:[#allocation6 + %s353]]
        %s356 = smul.f32 %s354, -2.0
        %s357 = smul.f32 %s355, -2.0
        %s358 = smul.f32 %s354, %s354
        %s359 = smul.f32 %s355, %s355
        %s360 = sadd.f32 %s358, %s359
        %v361 = vstv %s356
        %v362 = vmul.f32 %v361, %v250
        %v363 = vmul.f32 %v361, %v251
        %v364 = vstv %s360
        %v365 = vadd.f32 %v362, %v364
        %v366 = vadd.f32 %v363, %v364
        %v367 = vstv %s357
        %v368 = vmul.f32 %v367, %v255
        %v369 = vadd.f32 %v365, %v368
        %v370 = vadd.f32 %v366, %v368
        %v371 = vmin.f32 %v295, %v369
        %v372 = vmin.f32 %v296, %v370
        %s373 = sadd.s32 %s261, 6
        %s374 = sld [smem:[#allocation2 + %s373]]
        %s375 = sld [smem:[#allocation6 + %s373]]
        %s376 = smul.f32 %s374, -2.0
        %s377 = smul.f32 %s375, -2.0
        %s378 = smul.f32 %s374, %s374
        %s379 = smul.f32 %s375, %s375
        %s380 = sadd.f32 %s378, %s379
        %v381 = vstv %s376
        %v382 = vmul.f32 %v381, %v250
        %v383 = vmul.f32 %v381, %v251
        %v384 = vstv %s380
        %v385 = vadd.f32 %v382, %v384
        %v386 = vadd.f32 %v383, %v384
        %v387 = vstv %s377
        %v388 = vmul.f32 %v387, %v255
        %v389 = vadd.f32 %v385, %v388
        %v390 = vadd.f32 %v386, %v388
        %v391 = vmin.f32 %v313, %v389
        %v392 = vmin.f32 %v314, %v390
        %s393 = sadd.s32 %s261, 7
        %s394 = sld [smem:[#allocation2 + %s393]]
        %s395 = sld [smem:[#allocation6 + %s393]]
        %s396 = smul.f32 %s394, -2.0
        %s397 = smul.f32 %s395, -2.0
        %s398 = smul.f32 %s394, %s394
        %s399 = smul.f32 %s395, %s395
        %s400 = sadd.f32 %s398, %s399
        %v401 = vstv %s396
        %v402 = vmul.f32 %v401, %v250
        %v403 = vmul.f32 %v401, %v251
        %v404 = vstv %s400
        %v405 = vadd.f32 %v402, %v404
        %v406 = vadd.f32 %v403, %v404
        %v407 = vstv %s397
        %v408 = vmul.f32 %v407, %v255
        %v409 = vadd.f32 %v405, %v408
        %v410 = vadd.f32 %v406, %v408
        %v411 = vmin.f32 %v331, %v409
        %v412 = vmin.f32 %v332, %v410
        %s413 = sadd.s32 %s261, 8
        %s414 = sld [smem:[#allocation2 + %s413]]
        %s415 = sld [smem:[#allocation6 + %s413]]
        %s416 = smul.f32 %s414, -2.0
        %s417 = smul.f32 %s415, -2.0
        %s418 = smul.f32 %s414, %s414
        %s419 = smul.f32 %s415, %s415
        %s420 = sadd.f32 %s418, %s419
        %v421 = vstv %s416
        %v422 = vmul.f32 %v421, %v250
        %v423 = vmul.f32 %v421, %v251
        %v424 = vstv %s420
        %v425 = vadd.f32 %v422, %v424
        %v426 = vadd.f32 %v423, %v424
        %v427 = vstv %s417
        %v428 = vmul.f32 %v427, %v255
        %v429 = vadd.f32 %v425, %v428
        %v430 = vadd.f32 %v426, %v428
        %v431 = vmin.f32 %v351, %v429
        %v432 = vmin.f32 %v352, %v430
        %s433 = sadd.s32 %s261, 9
        %s434 = sld [smem:[#allocation2 + %s433]]
        %s435 = sld [smem:[#allocation6 + %s433]]
        %s436 = smul.f32 %s434, -2.0
        %s437 = smul.f32 %s435, -2.0
        %s438 = smul.f32 %s434, %s434
        %s439 = smul.f32 %s435, %s435
        %s440 = sadd.f32 %s438, %s439
        %v441 = vstv %s436
        %v442 = vmul.f32 %v441, %v250
        %v443 = vmul.f32 %v441, %v251
        %v444 = vstv %s440
        %v445 = vadd.f32 %v442, %v444
        %v446 = vadd.f32 %v443, %v444
        %v447 = vstv %s437
        %v448 = vmul.f32 %v447, %v255
        %v449 = vadd.f32 %v445, %v448
        %v450 = vadd.f32 %v446, %v448
        %v451 = vmin.f32 %v371, %v449
        %v452 = vmin.f32 %v372, %v450
        %s453 = sadd.s32 %s261, 10
        %s454 = sld [smem:[#allocation2 + %s453]]
        %s455 = sld [smem:[#allocation6 + %s453]]
        %s456 = smul.f32 %s454, -2.0
        %s457 = smul.f32 %s455, -2.0
        %s458 = smul.f32 %s454, %s454
        %s459 = smul.f32 %s455, %s455
        %s460 = sadd.f32 %s458, %s459
        %v461 = vstv %s456
        %v462 = vmul.f32 %v461, %v250
        %v463 = vmul.f32 %v461, %v251
        %v464 = vstv %s460
        %v465 = vadd.f32 %v462, %v464
        %v466 = vadd.f32 %v463, %v464
        %v467 = vstv %s457
        %v468 = vmul.f32 %v467, %v255
        %v469 = vadd.f32 %v465, %v468
        %v470 = vadd.f32 %v466, %v468
        %v471 = vmin.f32 %v391, %v469
        %v472 = vmin.f32 %v392, %v470
        %s473 = sadd.s32 %s261, 11
        %s474 = sld [smem:[#allocation2 + %s473]]
        %s475 = sld [smem:[#allocation6 + %s473]]
        %s476 = smul.f32 %s474, -2.0
        %s477 = smul.f32 %s475, -2.0
        %s478 = smul.f32 %s474, %s474
        %s479 = smul.f32 %s475, %s475
        %s480 = sadd.f32 %s478, %s479
        %v481 = vstv %s476
        %v482 = vmul.f32 %v481, %v250
        %v483 = vmul.f32 %v481, %v251
        %v484 = vstv %s480
        %v485 = vadd.f32 %v482, %v484
        %v486 = vadd.f32 %v483, %v484
        %v487 = vstv %s477
        %v488 = vmul.f32 %v487, %v255
        %v489 = vadd.f32 %v485, %v488
        %v490 = vadd.f32 %v486, %v488
        %v491 = vmin.f32 %v411, %v489
        %v492 = vmin.f32 %v412, %v490
        %s493 = sadd.s32 %s261, 12
        %s494 = sld [smem:[#allocation2 + %s493]]
        %s495 = sld [smem:[#allocation6 + %s493]]
        %s496 = smul.f32 %s494, -2.0
        %s497 = smul.f32 %s495, -2.0
        %s498 = smul.f32 %s494, %s494
        %s499 = smul.f32 %s495, %s495
        %s500 = sadd.f32 %s498, %s499
        %v501 = vstv %s496
        %v502 = vmul.f32 %v501, %v250
        %v503 = vmul.f32 %v501, %v251
        %v504 = vstv %s500
        %v505 = vadd.f32 %v502, %v504
        %v506 = vadd.f32 %v503, %v504
        %v507 = vstv %s497
        %v508 = vmul.f32 %v507, %v255
        %v509 = vadd.f32 %v505, %v508
        %v510 = vadd.f32 %v506, %v508
        %v511 = vmin.f32 %v431, %v509
        %v512 = vmin.f32 %v432, %v510
        %s513 = sadd.s32 %s261, 13
        %s514 = sld [smem:[#allocation2 + %s513]]
        %s515 = sld [smem:[#allocation6 + %s513]]
        %s516 = smul.f32 %s514, -2.0
        %s517 = smul.f32 %s515, -2.0
        %s518 = smul.f32 %s514, %s514
        %s519 = smul.f32 %s515, %s515
        %s520 = sadd.f32 %s518, %s519
        %v521 = vstv %s516
        %v522 = vmul.f32 %v521, %v250
        %v523 = vmul.f32 %v521, %v251
        %v524 = vstv %s520
        %v525 = vadd.f32 %v522, %v524
        %v526 = vadd.f32 %v523, %v524
        %v527 = vstv %s517
        %v528 = vmul.f32 %v527, %v255
        %v529 = vadd.f32 %v525, %v528
        %v530 = vadd.f32 %v526, %v528
        %v531 = vmin.f32 %v451, %v529
        %v532 = vmin.f32 %v452, %v530
        %s533 = sadd.s32 %s261, 14
        %s534 = sld [smem:[#allocation2 + %s533]]
        %s535 = sld [smem:[#allocation6 + %s533]]
        %s536 = smul.f32 %s534, -2.0
        %s537 = smul.f32 %s535, -2.0
        %s538 = smul.f32 %s534, %s534
        %s539 = smul.f32 %s535, %s535
        %s540 = sadd.f32 %s538, %s539
        %v541 = vstv %s536
        %v542 = vmul.f32 %v541, %v250
        %v543 = vmul.f32 %v541, %v251
        %v544 = vstv %s540
        %v545 = vadd.f32 %v542, %v544
        %v546 = vadd.f32 %v543, %v544
        %v547 = vstv %s537
        %v548 = vmul.f32 %v547, %v255
        %v549 = vadd.f32 %v545, %v548
        %v550 = vadd.f32 %v546, %v548
        %v551 = vmin.f32 %v471, %v549
        %v552 = vmin.f32 %v472, %v550
        %s553 = sadd.s32 %s261, 15
        %s554 = sld [smem:[#allocation2 + %s553]]
        %s555 = sld [smem:[#allocation6 + %s553]]
        %s556 = smul.f32 %s554, -2.0
        %s557 = smul.f32 %s555, -2.0
        %s558 = smul.f32 %s554, %s554
        %s559 = smul.f32 %s555, %s555
        %s560 = sadd.f32 %s558, %s559
        %v561 = vstv %s556
        %v562 = vmul.f32 %v561, %v250
        %v563 = vmul.f32 %v561, %v251
        %v564 = vstv %s560
        %v565 = vadd.f32 %v562, %v564
        %v566 = vadd.f32 %v563, %v564
        %v567 = vstv %s557
        %v568 = vmul.f32 %v567, %v255
        %v569 = vadd.f32 %v565, %v568
        %v570 = vadd.f32 %v566, %v568
        %v571 = vmin.f32 %v491, %v569
        %v572 = vmin.f32 %v492, %v570
        %v573 = vmin.f32 %v511, %v531
        %v574 = vmin.f32 %v512, %v532
        %v575 = vmin.f32 %v551, %v571
        %v576 = vmin.f32 %v552, %v572
        %v577 = vmin.f32 %v573, %v575
        %v578 = vmin.f32 %v574, %v576
        %v579 = vadd.f32 %v577, %v259
        %v580 = vadd.f32 %v578, %v260
        %v581 = vmax.f32 %v579, 0.0
        %v582 = vmax.f32 %v580, 0.0
        %v583 = vrsqrt.pop %v581
        %v584 = vmul.f32 %v581, %v583
        %vm585 = vcmp.eq.f32.partialorder %v581, inf
        %v586 = vsel %vm585, %v581, %v584
        %vm587 = vcmp.eq.f32.partialorder %v581, 0.0
        %v588 = vand.u32 %v581, 2147483648
        %v589 = vsel %vm587, %v588, %v586
        %v590 = vrsqrt.pop %v582
        %v591 = vmul.f32 %v582, %v590
        %vm592 = vcmp.eq.f32.partialorder %v582, inf
        %v593 = vsel %vm592, %v582, %v591
        %vm594 = vcmp.eq.f32.partialorder %v582, 0.0
        %v595 = vand.u32 %v582, 2147483648
        %v596 = vsel %vm594, %v595, %v593
        %s597 = sld [smem:[#allocation7 + %s25]]
        %s598 = sld [smem:[#allocation9 + %s25]]
        %s599 = sadd.f32 %s598, 1e-06
        %v600 = vstv %s599
        %v601 = vrcp.pop %v600
        %s602 = vtos %v601
        %s603 = smul.f32 %s597, %s602
        %s604 = sadd.f32 %s603, 1.0
        %v605 = vstv %s602
        %v606 = vmul.f32 %v589, %v605
        %v607 = vmul.f32 %v596, %v605
        %v608 = vstv %s604
        %v609 = vsub.f32 %v608, %v606
        %v610 = vsub.f32 %v608, %v607
        %v611 = vmax.f32 %v609, 0.0
        %v612 = vmax.f32 %v610, 0.0
        %v613 = vmin.f32 %v611, 1.0
        %v614 = vmin.f32 %v612, 1.0
        %615 = vst [vmem:[%s239] sm:$0xff] %v613
        %616 = vst [vmem:[%s239 + $0x8] sm:$0xff] %v614
        %s617 = sand.u32 %s127, 1
        %s618 = scalar_lea.sflag [#allocation3], %s617
        %s619 = sand.u32 %s127, 1
        %s620 = smul.addr %s619, 16
        %s621 = scalar_lea.vmem [#allocation10], %s620
        // Predicated region
        $region53: #{tpu_custom_call.1} parent=35 // pred_check
          %p622 = pneg %p137
        $region54: #{tpu_custom_call.1} parent=35 // pred_check_branch
          %624 = sbr.rel (%p622) target = $region56
        $region55: #{tpu_custom_call.1} parent=35 // pred_region
          %s625 = smul.u32 2, %s26
          %s627 = ssub.s32 256, 256
          %628 = vsyncadd %s618, %s627
          %s629 = smul.addr %s25, 2
          %s630 = sadd.s32 %s625, %s629
          %s631 = smul.addr %s630, 128
          %s632 = scalar_lea.hbm %s4, %s631
          %s633 = sshll.u32 %s621, 4
          %s634 = int_to_ptr.vmem [resolvable:$true] %s633
          %639 = dma.vmem_to_hbm [thread:$0]  %s634, 256, %s632, %s618, 128, 128, 8
        $region56: #{tpu_custom_call.1} parent=35 // pred_fallthru
          _
      $region36: #{tpu_custom_call.1} parent=5 // pred_fallthru
        _
      %p640 = scmp.le.s32.totalorder 2, %s16
      // Predicated region
      $region57: #{tpu_custom_call.1} parent=5 // pred_check
        %p641 = pneg %p640
      $region58: #{tpu_custom_call.1} parent=5 // pred_check_branch
        %643 = sbr.rel (%p641) target = $region60
      $region59: #{tpu_custom_call.1} parent=5 // pred_region
        %s644 = ssub.s32 %s16, 2
        // Predicated region
        $region61: #{tpu_custom_call.1} parent=59 // pred_check
          %p645 = pneg %p143
        $region62: #{tpu_custom_call.1} parent=59 // pred_check_branch
          %647 = sbr.rel (%p645) target = $region64
        $region63: #{tpu_custom_call.1} parent=59 // pred_region
          %s648 = sand.u32 %s128, 1
          %s649 = scalar_lea.sflag [#allocation3], %s648
          %s650 = sand.u32 %s128, 1
          %s651 = smul.addr %s650, 16
          %s652 = scalar_lea.vmem [#allocation10], %s651
          %653 = dma.done %s649, 256
        $region64: #{tpu_custom_call.1} parent=59 // pred_fallthru
          _
      $region60: #{tpu_custom_call.1} parent=5 // pred_fallthru
        _
    $region6: #{tpu_custom_call.1} parent=1 // loop_footer
      %s20 = sadd.s32 1, %s16
    $region7: #{tpu_custom_call.1} parent=1 // loop_footer_branch
      %15 = sbr.rel target = $region3
    $region8: #{tpu_custom_call.1} parent=1 // loop_exit
      _
    %654 = vsyncpa [#allocation3], 1
    %s655 = scalar_lea.sflag [#allocation3], 1
    %656 = vsyncpa %s655, 1
    %657 = vsyncpa [#allocation4], 1
    %s658 = scalar_lea.sflag [#allocation4], 1
    %659 = vsyncpa %s658, 1
    %660 = vsyncpa [#allocation5], 1
    %s661 = scalar_lea.sflag [#allocation5], 1
    %662 = vsyncpa %s661, 1
    %663 = vsyncpa [#allocation8], 1

</llo_original>
